<compile_context>
chip_gen: v7x
topology: tpu7x:2x2x1
jax: 0.10.0
libtpu: 0.0.40
codegen_flags: <defaults>
</compile_context>

<pallas_src>
import functools

import jax
import jax.numpy as jnp
from jax.experimental import pallas as pl
from jax.experimental.pallas import tpu as pltpu


# ---------------------------------------------------------------------------
# Kernel
# ---------------------------------------------------------------------------
def encoder_kernel(
    x_ref,
    w1_ref, b1_ref,
    w2_ref, b2_ref,
    w3_ref, b3_ref,
    w4_ref, b4_ref,
    wh_ref, bh_ref,
    out_ref,
    *,
    ew_bf16: bool,
):
    """Fused 4x(Linear+tanh) + fused (mean||log_var) head for one batch tile."""

    def layer(a_bf16, w_ref, b_ref):
        # bf16 MXU matmul, f32 accumulation, f32 bias add.
        acc = jnp.dot(a_bf16, w_ref[...], preferred_element_type=jnp.float32)
        acc = acc + b_ref[...]
        if ew_bf16:
            # v6e/v7x: cast once, tanh in bf16 (EUP bf16), feed next dot directly.
            return jnp.tanh(acc.astype(jnp.bfloat16))
        # v5e: no bf16 VPU/EUP -> tanh in f32, single cast before the next dot.
        return jnp.tanh(acc).astype(jnp.bfloat16)

    # Cast x to bf16 inside the kernel (free VPU filler under MXU/EUP slack);
    # the wrapper never makes a separate HBM pass over x.
    h = layer(x_ref[...].astype(jnp.bfloat16), w1_ref, b1_ref)
    h = layer(h, w2_ref, b2_ref)
    h = layer(h, w3_ref, b3_ref)
    h = layer(h, w4_ref, b4_ref)

    # Fused mean/log_var head: one lane-dense [tile_b, 2*latent] matmul + store.
    out_ref[...] = (
        jnp.dot(h, wh_ref[...], preferred_element_type=jnp.float32) + bh_ref[...]
    ).astype(out_ref.dtype)


# ---------------------------------------------------------------------------
# Wrapper / tiling policy
# ---------------------------------------------------------------------------
_TILE_B_PREF = 1024  # ~86% of HBM roofline per measured tiled-kernel data.


def _round_up(n, m):
    return ((n + m - 1) // m) * m


@functools.lru_cache(maxsize=1)
def _tpu_generation():
    """Best-effort TPU generation from device_kind; 0 if unknown."""
    try:
        kind = jax.devices()[0].device_kind.lower()
    except Exception:
        return 0
    for gen in (7, 6, 5, 4, 3, 2):
        if f"v{gen}" in kind:
            return gen
    return 0


def _pick_tiling(batch, min_steps):
    """Batch tile (multiple of 8) and padded batch; >= min_steps grid steps."""
    b8 = _round_up(max(batch, 1), 8)
    tile = min(_TILE_B_PREF, b8)
    if min_steps > 1 and b8 >= min_steps * 8:
        # v7x megacore: make sure the 'parallel' batch axis has >= 2 steps.
        tile = min(tile, _round_up(-(-b8 // min_steps), 8))
    b_pad = _round_up(b8, tile)
    return tile, b_pad


def prepare_params(params):
    """One-time parameter prep, hoisted out of the per-call path:
    bf16 weight casts + fused (mean||log_var) head."""
    wh = jnp.concatenate([params["wm"], params["wv"]], axis=1)
    bh = jnp.concatenate([params["bm"], params["bv"]], axis=1)
    prep = {
        "w1": params["w1"].astype(jnp.bfloat16), "b1": params["b1"].astype(jnp.float32),
        "w2": params["w2"].astype(jnp.bfloat16), "b2": params["b2"].astype(jnp.float32),
        "w3": params["w3"].astype(jnp.bfloat16), "b3": params["b3"].astype(jnp.float32),
        "w4": params["w4"].astype(jnp.bfloat16), "b4": params["b4"].astype(jnp.float32),
        "wh": wh.astype(jnp.bfloat16),           "bh": bh.astype(jnp.float32),
    }
    return jax.device_put(prep)


@functools.partial(jax.jit, static_argnames=("tile_b", "b_pad", "ew_bf16"))
def _encoder_impl(x, prep, *, tile_b, b_pad, ew_bf16):
    B, input_dim = x.shape
    two_latent = prep["wh"].shape[1]

    if b_pad != B:
        x = jnp.pad(x, ((0, b_pad - B), (0, 0)))

    def resident(arr):
        # Full-shape block, constant index -> stays VMEM-resident across the grid.
        return pl.BlockSpec(arr.shape, lambda i: (0, 0))

    out = pl.pallas_call(
        functools.partial(encoder_kernel, ew_bf16=ew_bf16),
        out_shape=jax.ShapeDtypeStruct((b_pad, two_latent), jnp.float32),
        grid=(b_pad // tile_b,),
        in_specs=[
            pl.BlockSpec((tile_b, input_dim), lambda i: (i, 0)),
            resident(prep["w1"]), resident(prep["b1"]),
            resident(prep["w2"]), resident(prep["b2"]),
            resident(prep["w3"]), resident(prep["b3"]),
            resident(prep["w4"]), resident(prep["b4"]),
            resident(prep["wh"]), resident(prep["bh"]),
        ],
        out_specs=pl.BlockSpec((tile_b, two_latent), lambda i: (i, 0)),
        compiler_params=pltpu.CompilerParams(
            dimension_semantics=("parallel",),
        ),
    )(
        x,
        prep["w1"], prep["b1"],
        prep["w2"], prep["b2"],
        prep["w3"], prep["b3"],
        prep["w4"], prep["b4"],
        prep["wh"], prep["bh"],
    )

    out = out[:B]
    latent = two_latent // 2
    return out[:, :latent], out[:, latent:]


def encoder_forward(x, prep):
    """x: [B, input_dim] float32. prep: output of prepare_params.
    Returns (mean, log_var), each [B, latent_dim] float32."""
    gen = _tpu_generation()
    ew_bf16 = gen >= 6            # bf16 VPU/EUP exist on v6e/v7x only.
    min_steps = 2 if gen >= 7 else 1  # v7x: 2 TensorCores per chip.
    tile_b, b_pad = _pick_tiling(x.shape[0], min_steps)
    return _encoder_impl(x, prep, tile_b=tile_b, b_pad=b_pad, ew_bf16=ew_bf16)


# ---------------------------------------------------------------------------
# Parameter init (PyTorch-style) and references
# ---------------------------------------------------------------------------
def init_linear(key, in_dim, out_dim):
    """PyTorch-style uniform init; returns (W_T [in,out], b_row [1,out])."""
    kw, kb = jax.random.split(key)
    bound = 1.0 / jnp.sqrt(jnp.float32(in_dim))
    w = jax.random.uniform(kw, (out_dim, in_dim), jnp.float32, -bound, bound)
    b = jax.random.uniform(kb, (out_dim,), jnp.float32, -bound, bound)
    return jnp.transpose(w), b.reshape(1, out_dim)


def make_params(key, input_dim, h1, h2, h3, h4, latent_dim):
    keys = jax.random.split(key, 6)
    params = {}
    params["w1"], params["b1"] = init_linear(keys[0], input_dim, h1)
    params["w2"], params["b2"] = init_linear(keys[1], h1, h2)
    params["w3"], params["b3"] = init_linear(keys[2], h2, h3)
    params["w4"], params["b4"] = init_linear(keys[3], h3, h4)
    # NOTE: FC_mean / FC_var are declared with hidden_dim2 inputs in the
    # PyTorch module but applied to the hidden_dim4-sized activation; all
    # hidden dims equal 20*num_filters, so this is consistent.
    params["wm"], params["bm"] = init_linear(keys[4], h4, latent_dim)
    params["wv"], params["bv"] = init_linear(keys[5], h4, latent_dim)
    return params


def reference_forward_f32(x, params):
    """Pure-JAX f32 reference of the PyTorch forward."""
    h = jnp.tanh(x @ params["w1"] + params["b1"])
    h = jnp.tanh(h @ params["w2"] + params["b2"])
    h = jnp.tanh(h @ params["w3"] + params["b3"])
    h = jnp.tanh(h @ params["w4"] + params["b4"])
    mean = h @ params["wm"] + params["bm"]
    log_var = h @ params["wv"] + params["bv"]
    return mean, log_var


def reference_forward_matched(x, params, ew_bf16):
    """Precision-matched reference: bf16 matmul operands, f32 accumulation,
    and the same element-wise dtype policy as the kernel."""
    def mm(a, w):
        return jnp.dot(a.astype(jnp.bfloat16), w.astype(jnp.bfloat16),
                       preferred_element_type=jnp.float32)

    def act(z):
        return jnp.tanh(z.astype(jnp.bfloat16)) if ew_bf16 else jnp.tanh(z)

    h = act(mm(x, params["w1"]) + params["b1"])
    h = act(mm(h, params["w2"]) + params["b2"])
    h = act(mm(h, params["w3"]) + params["b3"])
    h = act(mm(h, params["w4"]) + params["b4"])
    mean = mm(h, params["wm"]) + params["bm"]
    log_var = mm(h, params["wv"]) + params["bv"]
    return mean, log_var


# ---------------------------------------------------------------------------
# Self-test
# ---------------------------------------------------------------------------
if __name__ == "__main__":
    num_filters = 8
    hidden_dim1 = 20 * num_filters   # 160
    hidden_dim2 = 20 * num_filters   # 160
    hidden_dim3 = 20 * num_filters   # 160
    hidden_dim4 = 20 * num_filters   # 160
    latent_dim = 10 * num_filters    # 80

    batch = 8
    input_dim = 64

    key = jax.random.PRNGKey(0)
    k_x, k_x2, k_p = jax.random.split(key, 3)

    x = jax.random.normal(k_x, (batch, input_dim), jnp.float32)
    params = make_params(
        k_p, input_dim, hidden_dim1, hidden_dim2, hidden_dim3, hidden_dim4, latent_dim
    )
    prep = prepare_params(params)   # one-time: bf16 casts + fused head

    ew_bf16 = _tpu_generation() >= 6

    # --- small batch (single tile) ---------------------------------------
    mean, log_var = encoder_forward(x, prep)
    jax.block_until_ready((mean, log_var))
    assert mean.shape == (batch, latent_dim)
    assert log_var.shape == (batch, latent_dim)

    ref_mean_m, ref_logvar_m = reference_forward_matched(x, params, ew_bf16)
    assert jnp.allclose(mean, ref_mean_m, atol=2e-2, rtol=2e-2)
    assert jnp.allclose(log_var, ref_logvar_m, atol=2e-2, rtol=2e-2)

    ref_mean_f32, ref_logvar_f32 = reference_forward_f32(x, params)
    assert jnp.allclose(mean, ref_mean_f32, atol=6e-2, rtol=6e-2)
    assert jnp.allclose(log_var, ref_logvar_f32, atol=6e-2, rtol=6e-2)

    # --- non-multiple batch (exercises batch padding / multi-step grid) ---
    batch2 = 300
    x2 = jax.random.normal(k_x2, (batch2, input_dim), jnp.float32)
    mean2, log_var2 = encoder_forward(x2, prep)
    jax.block_until_ready((mean2, log_var2))
    assert mean2.shape == (batch2, latent_dim)
    assert log_var2.shape == (batch2, latent_dim)

    ref_mean2, ref_logvar2 = reference_forward_matched(x2, params, ew_bf16)
    assert jnp.allclose(mean2, ref_mean2, atol=2e-2, rtol=2e-2)
    assert jnp.allclose(log_var2, ref_logvar2, atol=2e-2, rtol=2e-2)

    print("KERNEL_OK")
</pallas_src>

<mosaic_0001>
module attributes {stable_mosaic.version = 11 : i64} {
  func.func @encoder_kernel(%arg0: i32, %arg1: memref<8x64xf32, #tpu.memory_space<vmem>>, %arg2: memref<64x160xbf16, #tpu.memory_space<vmem>>, %arg3: memref<1x160xf32, #tpu.memory_space<vmem>>, %arg4: memref<160x160xbf16, #tpu.memory_space<vmem>>, %arg5: memref<1x160xf32, #tpu.memory_space<vmem>>, %arg6: memref<160x160xbf16, #tpu.memory_space<vmem>>, %arg7: memref<1x160xf32, #tpu.memory_space<vmem>>, %arg8: memref<160x160xbf16, #tpu.memory_space<vmem>>, %arg9: memref<1x160xf32, #tpu.memory_space<vmem>>, %arg10: memref<160x160xbf16, #tpu.memory_space<vmem>>, %arg11: memref<1x160xf32, #tpu.memory_space<vmem>>, %arg12: memref<8x160xf32, #tpu.memory_space<vmem>>) attributes {dimension_semantics = [#tpu.dimension_semantics<parallel>], iteration_bounds = array<i64: 1>, scalar_prefetch = 0 : i64, scratch_operands = 0 : i64, tpu.core_type = #tpu.core_type<tc>, window_params = [{transform_indices = @transform_0, window_bounds = array<i64: 8, 64>}, {pipeline_mode = #tpu.pipeline_mode<synchronous>, transform_indices = @transform_1, window_bounds = array<i64: 64, 160>}, {pipeline_mode = #tpu.pipeline_mode<synchronous>, transform_indices = @transform_2, window_bounds = array<i64: 1, 160>}, {pipeline_mode = #tpu.pipeline_mode<synchronous>, transform_indices = @transform_3, window_bounds = array<i64: 160, 160>}, {pipeline_mode = #tpu.pipeline_mode<synchronous>, transform_indices = @transform_4, window_bounds = array<i64: 1, 160>}, {pipeline_mode = #tpu.pipeline_mode<synchronous>, transform_indices = @transform_5, window_bounds = array<i64: 160, 160>}, {pipeline_mode = #tpu.pipeline_mode<synchronous>, transform_indices = @transform_6, window_bounds = array<i64: 1, 160>}, {pipeline_mode = #tpu.pipeline_mode<synchronous>, transform_indices = @transform_7, window_bounds = array<i64: 160, 160>}, {pipeline_mode = #tpu.pipeline_mode<synchronous>, transform_indices = @transform_8, window_bounds = array<i64: 1, 160>}, {pipeline_mode = #tpu.pipeline_mode<synchronous>, transform_indices = @transform_9, window_bounds = array<i64: 160, 160>}, {pipeline_mode = #tpu.pipeline_mode<synchronous>, transform_indices = @transform_10, window_bounds = array<i64: 1, 160>}, {transform_indices = @transform_11, window_bounds = array<i64: 8, 160>}]} {
    %c0 = arith.constant 0 : index
    %c0_0 = arith.constant 0 : index
    %0 = vector.load %arg1[%c0, %c0_0] : memref<8x64xf32, #tpu.memory_space<vmem>>, vector<8x64xf32>
    %1 = arith.truncf %0 : vector<8x64xf32> to vector<8x64xbf16>
    %c0_1 = arith.constant 0 : index
    %c0_2 = arith.constant 0 : index
    %2 = vector.load %arg2[%c0_1, %c0_2] : memref<64x160xbf16, #tpu.memory_space<vmem>>, vector<64x160xbf16>
    %cst = arith.constant dense<0.000000e+00> : vector<8x160xf32>
    %3 = tpu.matmul %1, %2, %cst {dimension_numbers = #tpu.dot_dimension_numbers<[1], [0], [0], [1], [0, 0, 1, 1], [], []>} : vector<8x64xbf16>, vector<64x160xbf16>, vector<8x160xf32> -> vector<8x160xf32>
    %c0_3 = arith.constant 0 : index
    %c0_4 = arith.constant 0 : index
    %4 = vector.load %arg3[%c0_3, %c0_4] : memref<1x160xf32, #tpu.memory_space<vmem>>, vector<1x160xf32>
    %5 = vector.broadcast %4 : vector<1x160xf32> to vector<8x160xf32>
    %6 = arith.addf %3, %5 : vector<8x160xf32>
    %7 = math.tanh %6 : vector<8x160xf32>
    %8 = arith.truncf %7 : vector<8x160xf32> to vector<8x160xbf16>
    %c0_5 = arith.constant 0 : index
    %c0_6 = arith.constant 0 : index
    %9 = vector.load %arg4[%c0_5, %c0_6] : memref<160x160xbf16, #tpu.memory_space<vmem>>, vector<160x160xbf16>
    %cst_7 = arith.constant dense<0.000000e+00> : vector<8x160xf32>
    %10 = tpu.matmul %8, %9, %cst_7 {dimension_numbers = #tpu.dot_dimension_numbers<[1], [0], [0], [1], [0, 0, 1, 1], [], []>} : vector<8x160xbf16>, vector<160x160xbf16>, vector<8x160xf32> -> vector<8x160xf32>
    %c0_8 = arith.constant 0 : index
    %c0_9 = arith.constant 0 : index
    %11 = vector.load %arg5[%c0_8, %c0_9] : memref<1x160xf32, #tpu.memory_space<vmem>>, vector<1x160xf32>
    %12 = vector.broadcast %11 : vector<1x160xf32> to vector<8x160xf32>
    %13 = arith.addf %10, %12 : vector<8x160xf32>
    %14 = math.tanh %13 : vector<8x160xf32>
    %15 = arith.truncf %14 : vector<8x160xf32> to vector<8x160xbf16>
    %c0_10 = arith.constant 0 : index
    %c0_11 = arith.constant 0 : index
    %16 = vector.load %arg6[%c0_10, %c0_11] : memref<160x160xbf16, #tpu.memory_space<vmem>>, vector<160x160xbf16>
    %cst_12 = arith.constant dense<0.000000e+00> : vector<8x160xf32>
    %17 = tpu.matmul %15, %16, %cst_12 {dimension_numbers = #tpu.dot_dimension_numbers<[1], [0], [0], [1], [0, 0, 1, 1], [], []>} : vector<8x160xbf16>, vector<160x160xbf16>, vector<8x160xf32> -> vector<8x160xf32>
    %c0_13 = arith.constant 0 : index
    %c0_14 = arith.constant 0 : index
    %18 = vector.load %arg7[%c0_13, %c0_14] : memref<1x160xf32, #tpu.memory_space<vmem>>, vector<1x160xf32>
    %19 = vector.broadcast %18 : vector<1x160xf32> to vector<8x160xf32>
    %20 = arith.addf %17, %19 : vector<8x160xf32>
    %21 = math.tanh %20 : vector<8x160xf32>
    %22 = arith.truncf %21 : vector<8x160xf32> to vector<8x160xbf16>
    %c0_15 = arith.constant 0 : index
    %c0_16 = arith.constant 0 : index
    %23 = vector.load %arg8[%c0_15, %c0_16] : memref<160x160xbf16, #tpu.memory_space<vmem>>, vector<160x160xbf16>
    %cst_17 = arith.constant dense<0.000000e+00> : vector<8x160xf32>
    %24 = tpu.matmul %22, %23, %cst_17 {dimension_numbers = #tpu.dot_dimension_numbers<[1], [0], [0], [1], [0, 0, 1, 1], [], []>} : vector<8x160xbf16>, vector<160x160xbf16>, vector<8x160xf32> -> vector<8x160xf32>
    %c0_18 = arith.constant 0 : index
    %c0_19 = arith.constant 0 : index
    %25 = vector.load %arg9[%c0_18, %c0_19] : memref<1x160xf32, #tpu.memory_space<vmem>>, vector<1x160xf32>
    %26 = vector.broadcast %25 : vector<1x160xf32> to vector<8x160xf32>
    %27 = arith.addf %24, %26 : vector<8x160xf32>
    %28 = math.tanh %27 : vector<8x160xf32>
    %29 = arith.truncf %28 : vector<8x160xf32> to vector<8x160xbf16>
    %c0_20 = arith.constant 0 : index
    %c0_21 = arith.constant 0 : index
    %30 = vector.load %arg10[%c0_20, %c0_21] : memref<160x160xbf16, #tpu.memory_space<vmem>>, vector<160x160xbf16>
    %cst_22 = arith.constant dense<0.000000e+00> : vector<8x160xf32>
    %31 = tpu.matmul %29, %30, %cst_22 {dimension_numbers = #tpu.dot_dimension_numbers<[1], [0], [0], [1], [0, 0, 1, 1], [], []>} : vector<8x160xbf16>, vector<160x160xbf16>, vector<8x160xf32> -> vector<8x160xf32>
    %c0_23 = arith.constant 0 : index
    %c0_24 = arith.constant 0 : index
    %32 = vector.load %arg11[%c0_23, %c0_24] : memref<1x160xf32, #tpu.memory_space<vmem>>, vector<1x160xf32>
    %33 = vector.broadcast %32 : vector<1x160xf32> to vector<8x160xf32>
    %34 = arith.addf %31, %33 : vector<8x160xf32>
    %c0_25 = arith.constant 0 : index
    %c0_26 = arith.constant 0 : index
    %35 = vector.load %arg12[%c0_25, %c0_26] : memref<8x160xf32, #tpu.memory_space<vmem>>, vector<8x160xf32>
    tpu.vector_store %arg12[%c0_25, %c0_26], %34 {strides = array<i32>} : memref<8x160xf32, #tpu.memory_space<vmem>>, vector<8x160xf32>,
    return
  }
  func.func @transform_0(%arg0: i32) -> (i32, i32) {
    %c0_i32 = arith.constant 0 : i32
    %c0_i32_0 = arith.constant 0 : i32
    return %arg0, %c0_i32 : i32, i32
  }
  func.func @transform_1(%arg0: i32) -> (i32, i32) {
    %c0_i32 = arith.constant 0 : i32
    %c0_i32_0 = arith.constant 0 : i32
    %c0_i32_1 = arith.constant 0 : i32
    return %c0_i32, %c0_i32_0 : i32, i32
  }
  func.func @transform_2(%arg0: i32) -> (i32, i32) {
    %c0_i32 = arith.constant 0 : i32
    %c0_i32_0 = arith.constant 0 : i32
    %c0_i32_1 = arith.constant 0 : i32
    return %c0_i32, %c0_i32_0 : i32, i32
  }
  func.func @transform_3(%arg0: i32) -> (i32, i32) {
    %c0_i32 = arith.constant 0 : i32
    %c0_i32_0 = arith.constant 0 : i32
    %c0_i32_1 = arith.constant 0 : i32
    return %c0_i32, %c0_i32_0 : i32, i32
  }
  func.func @transform_4(%arg0: i32) -> (i32, i32) {
    %c0_i32 = arith.constant 0 : i32
    %c0_i32_0 = arith.constant 0 : i32
    %c0_i32_1 = arith.constant 0 : i32
    return %c0_i32, %c0_i32_0 : i32, i32
  }
  func.func @transform_5(%arg0: i32) -> (i32, i32) {
    %c0_i32 = arith.constant 0 : i32
    %c0_i32_0 = arith.constant 0 : i32
    %c0_i32_1 = arith.constant 0 : i32
    return %c0_i32, %c0_i32_0 : i32, i32
  }
  func.func @transform_6(%arg0: i32) -> (i32, i32) {
    %c0_i32 = arith.constant 0 : i32
    %c0_i32_0 = arith.constant 0 : i32
    %c0_i32_1 = arith.constant 0 : i32
    return %c0_i32, %c0_i32_0 : i32, i32
  }
  func.func @transform_7(%arg0: i32) -> (i32, i32) {
    %c0_i32 = arith.constant 0 : i32
    %c0_i32_0 = arith.constant 0 : i32
    %c0_i32_1 = arith.constant 0 : i32
    return %c0_i32, %c0_i32_0 : i32, i32
  }
  func.func @transform_8(%arg0: i32) -> (i32, i32) {
    %c0_i32 = arith.constant 0 : i32
    %c0_i32_0 = arith.constant 0 : i32
    %c0_i32_1 = arith.constant 0 : i32
    return %c0_i32, %c0_i32_0 : i32, i32
  }
  func.func @transform_9(%arg0: i32) -> (i32, i32) {
    %c0_i32 = arith.constant 0 : i32
    %c0_i32_0 = arith.constant 0 : i32
    %c0_i32_1 = arith.constant 0 : i32
    return %c0_i32, %c0_i32_0 : i32, i32
  }
  func.func @transform_10(%arg0: i32) -> (i32, i32) {
    %c0_i32 = arith.constant 0 : i32
    %c0_i32_0 = arith.constant 0 : i32
    %c0_i32_1 = arith.constant 0 : i32
    return %c0_i32, %c0_i32_0 : i32, i32
  }
  func.func @transform_11(%arg0: i32) -> (i32, i32) {
    %c0_i32 = arith.constant 0 : i32
    %c0_i32_0 = arith.constant 0 : i32
    return %arg0, %c0_i32 : i32, i32
  }
}

</mosaic_0001>

<llo_original>
// kernel: _encoder_impl.1
$region0: #{_encoder_impl.1}
  #allocation0 [shape = 'u32[]', space=smem, size = 0x4, offset = 0x4, fixed_abs, tag = 'smem constant byte address 0x4 - core index']
  #allocation1 [shape = 'u32[144,128]{1,0:T(1,128)}', space=vmem, size = 0x12000, scoped, tag = 'internal scratch']
  %s0 = inlined_call_operand.hbm [shape: f32[8,64], index: 0, kind: input, shape index: {}]
  %s1 = inlined_call_operand.hbm [shape: bf16[64,160], index: 1, kind: input, shape index: {}]
  %s2 = inlined_call_operand.vmem [shape: f32[1,160], index: 2, kind: input, shape index: {}]
  %s3 = inlined_call_operand.hbm [shape: bf16[160,160], index: 3, kind: input, shape index: {}]
  %s4 = inlined_call_operand.vmem [shape: f32[1,160], index: 4, kind: input, shape index: {}]
  %s5 = inlined_call_operand.hbm [shape: bf16[160,160], index: 5, kind: input, shape index: {}]
  %s6 = inlined_call_operand.vmem [shape: f32[1,160], index: 6, kind: input, shape index: {}]
  %s7 = inlined_call_operand.hbm [shape: bf16[160,160], index: 7, kind: input, shape index: {}]
  %s8 = inlined_call_operand.vmem [shape: f32[1,160], index: 8, kind: input, shape index: {}]
  %s9 = inlined_call_operand.hbm [shape: bf16[160,160], index: 9, kind: input, shape index: {}]
  %s10 = inlined_call_operand.vmem [shape: f32[1,160], index: 10, kind: input, shape index: {}]
  %s11 = inlined_call_operand.vmem [shape: f32[8,160], index: 11, kind: output, shape index: {}]
  %s12 = sld [smem:[#allocation0]]
  $region78: #{_encoder_impl.1} parent=0
    _
  %s14 = ssub.s32 1, %s12
  %s15 = scalar_select 0, %s14, %s12
  $region1: #{_encoder_impl.1} parent=0
    #allocation2 [shape = 'u8[4096]{0}', space=vmem, size = 0x1000, scoped, tag = 'input window, operand 0, single buffered']
    #allocation3 [shape = 's32[1]{0}', space=sflag, size = 0x4, scoped, tag = 'scoped memory for _encoder_impl.1']
    #allocation4 [shape = 'u8[32768]{0}', space=vmem, size = 0x8000, scoped, tag = 'input window, operand 1, single buffered']
    #allocation5 [shape = 's32[1]{0}', space=sflag, size = 0x4, scoped, tag = 'scoped memory for _encoder_impl.1']
    #allocation6 [shape = 'u8[81920]{0}', space=vmem, size = 0x14000, scoped, tag = 'input window, operand 3, single buffered']
    #allocation7 [shape = 'u8[81920]{0}', space=vmem, size = 0x14000, scoped, tag = 'input window, operand 5, single buffered']
    #allocation8 [shape = 's32[1]{0}', space=sflag, size = 0x4, scoped, tag = 'scoped memory for _encoder_impl.1']
    #allocation9 [shape = 'u8[81920]{0}', space=vmem, size = 0x14000, scoped, tag = 'input window, operand 7, single buffered']
    #allocation10 [shape = 'u8[81920]{0}', space=vmem, size = 0x14000, scoped, tag = 'input window, operand 9, single buffered']
    #allocation11 [shape = 's32[1]{0}', space=sflag, size = 0x4, scoped, tag = 'scoped memory for _encoder_impl.1']
    %16 = vsyncpa [#allocation3], 0
    %17 = vsyncpa [#allocation5], 0
    %18 = vsyncpa [#allocation8], 0
    %19 = vsyncpa [#allocation11], 0
    // Predicated region
    $region2: #{_encoder_impl.1} parent=1 // pred_check
      _
    $region3: #{_encoder_impl.1} parent=1 // pred_check_branch
      %21 = sbr.rel (0) target = $region5
    $region4: #{_encoder_impl.1} parent=1 // pred_region
      %s23 = ssub.s32 128, 128
      %24 = vsyncadd [#allocation3], %s23
      %s26 = sshll.u32 [#allocation2], 4
      %s27 = int_to_ptr.vmem [resolvable:$true] %s26
      %29 = dma.hbm_to_vmem [thread:$0]  %s0, 128, %s27, [#allocation3]
    $region5: #{_encoder_impl.1} parent=1 // pred_fallthru
      _
    // Predicated region
    $region6: #{_encoder_impl.1} parent=1 // pred_check
      _
    $region7: #{_encoder_impl.1} parent=1 // pred_check_branch
      %31 = sbr.rel (0) target = $region9
    $region8: #{_encoder_impl.1} parent=1 // pred_region
      %s33 = ssub.s32 1024, 1024
      %34 = vsyncadd [#allocation5], %s33
      %s35 = sshll.u32 [#allocation4], 4
      %s36 = int_to_ptr.vmem [resolvable:$true] %s35
      %41 = dma.hbm_to_vmem [thread:$0]  %s1, 1024, %s36, [#allocation5], 128, 128, 8
    $region9: #{_encoder_impl.1} parent=1 // pred_fallthru
      _
    // Predicated region
    $region10: #{_encoder_impl.1} parent=1 // pred_check
      _
    $region11: #{_encoder_impl.1} parent=1 // pred_check_branch
      %43 = sbr.rel (0) target = $region13
    $region12: #{_encoder_impl.1} parent=1 // pred_region
      _
    $region13: #{_encoder_impl.1} parent=1 // pred_fallthru
      _
    // Predicated region
    $region14: #{_encoder_impl.1} parent=1 // pred_check
      _
    $region15: #{_encoder_impl.1} parent=1 // pred_check_branch
      %45 = sbr.rel (0) target = $region17
    $region16: #{_encoder_impl.1} parent=1 // pred_region
      %s47 = ssub.s32 2560, 2560
      %48 = vsyncadd [#allocation5], %s47
      %s49 = sshll.u32 [#allocation6], 4
      %s50 = int_to_ptr.vmem [resolvable:$true] %s49
      %55 = dma.hbm_to_vmem [thread:$0]  %s3, 2560, %s50, [#allocation5], 128, 128, 8
    $region17: #{_encoder_impl.1} parent=1 // pred_fallthru
      _
    // Predicated region
    $region18: #{_encoder_impl.1} parent=1 // pred_check
      _
    $region19: #{_encoder_impl.1} parent=1 // pred_check_branch
      %57 = sbr.rel (0) target = $region21
    $region20: #{_encoder_impl.1} parent=1 // pred_region
      _
    $region21: #{_encoder_impl.1} parent=1 // pred_fallthru
      _
    // Predicated region
    $region22: #{_encoder_impl.1} parent=1 // pred_check
      _
    $region23: #{_encoder_impl.1} parent=1 // pred_check_branch
      %59 = sbr.rel (0) target = $region25
    $region24: #{_encoder_impl.1} parent=1 // pred_region
      %s61 = ssub.s32 2560, 2560
      %62 = vsyncadd [#allocation8], %s61
      %s63 = sshll.u32 [#allocation7], 4
      %s64 = int_to_ptr.vmem [resolvable:$true] %s63
      %69 = dma.hbm_to_vmem [thread:$0]  %s5, 2560, %s64, [#allocation8], 128, 128, 8
    $region25: #{_encoder_impl.1} parent=1 // pred_fallthru
      _
    // Predicated region
    $region26: #{_encoder_impl.1} parent=1 // pred_check
      _
    $region27: #{_encoder_impl.1} parent=1 // pred_check_branch
      %71 = sbr.rel (0) target = $region29
    $region28: #{_encoder_impl.1} parent=1 // pred_region
      _
    $region29: #{_encoder_impl.1} parent=1 // pred_fallthru
      _
    // Predicated region
    $region30: #{_encoder_impl.1} parent=1 // pred_check
      _
    $region31: #{_encoder_impl.1} parent=1 // pred_check_branch
      %73 = sbr.rel (0) target = $region33
    $region32: #{_encoder_impl.1} parent=1 // pred_region
      %s75 = ssub.s32 2560, 2560
      %76 = vsyncadd [#allocation8], %s75
      %s77 = sshll.u32 [#allocation9], 4
      %s78 = int_to_ptr.vmem [resolvable:$true] %s77
      %83 = dma.hbm_to_vmem [thread:$0]  %s7, 2560, %s78, [#allocation8], 128, 128, 8
    $region33: #{_encoder_impl.1} parent=1 // pred_fallthru
      _
    // Predicated region
    $region34: #{_encoder_impl.1} parent=1 // pred_check
      _
    $region35: #{_encoder_impl.1} parent=1 // pred_check_branch
      %85 = sbr.rel (0) target = $region37
    $region36: #{_encoder_impl.1} parent=1 // pred_region
      _
    $region37: #{_encoder_impl.1} parent=1 // pred_fallthru
      _
    // Predicated region
    $region38: #{_encoder_impl.1} parent=1 // pred_check
      _
    $region39: #{_encoder_impl.1} parent=1 // pred_check_branch
      %87 = sbr.rel (0) target = $region41
    $region40: #{_encoder_impl.1} parent=1 // pred_region
      %s89 = ssub.s32 2560, 2560
      %90 = vsyncadd [#allocation11], %s89
      %s91 = sshll.u32 [#allocation10], 4
      %s92 = int_to_ptr.vmem [resolvable:$true] %s91
      %97 = dma.hbm_to_vmem [thread:$0]  %s9, 2560, %s92, [#allocation11], 128, 128, 8
    $region41: #{_encoder_impl.1} parent=1 // pred_fallthru
      _
    // Predicated region
    $region42: #{_encoder_impl.1} parent=1 // pred_check
      _
    $region43: #{_encoder_impl.1} parent=1 // pred_check_branch
      %99 = sbr.rel (0) target = $region45
    $region44: #{_encoder_impl.1} parent=1 // pred_region
      _
    $region45: #{_encoder_impl.1} parent=1 // pred_fallthru
      _
    // Predicated region
    $region46: #{_encoder_impl.1} parent=1 // pred_check
      _
    $region47: #{_encoder_impl.1} parent=1 // pred_check_branch
      %101 = sbr.rel (0) target = $region49
    $region48: #{_encoder_impl.1} parent=1 // pred_region
      %102 = dma.done [#allocation3], 128
    $region49: #{_encoder_impl.1} parent=1 // pred_fallthru
      _
    // Predicated region
    $region50: #{_encoder_impl.1} parent=1 // pred_check
      _
    $region51: #{_encoder_impl.1} parent=1 // pred_check_branch
      %104 = sbr.rel (0) target = $region53
    $region52: #{_encoder_impl.1} parent=1 // pred_region
      %105 = dma.done [#allocation5], 1024
    $region53: #{_encoder_impl.1} parent=1 // pred_fallthru
      _
    // Predicated region
    $region54: #{_encoder_impl.1} parent=1 // pred_check
      _
    $region55: #{_encoder_impl.1} parent=1 // pred_check_branch
      %107 = sbr.rel (0) target = $region57
    $region56: #{_encoder_impl.1} parent=1 // pred_region
      %108 = dma.done [#allocation5], 2560
    $region57: #{_encoder_impl.1} parent=1 // pred_fallthru
      _
    // Predicated region
    $region58: #{_encoder_impl.1} parent=1 // pred_check
      _
    $region59: #{_encoder_impl.1} parent=1 // pred_check_branch
      %110 = sbr.rel (0) target = $region61
    $region60: #{_encoder_impl.1} parent=1 // pred_region
      %111 = dma.done [#allocation8], 2560
    $region61: #{_encoder_impl.1} parent=1 // pred_fallthru
      _
    // Predicated region
    $region62: #{_encoder_impl.1} parent=1 // pred_check
      _
    $region63: #{_encoder_impl.1} parent=1 // pred_check_branch
      %113 = sbr.rel (0) target = $region65
    $region64: #{_encoder_impl.1} parent=1 // pred_region
      %114 = dma.done [#allocation8], 2560
    $region65: #{_encoder_impl.1} parent=1 // pred_fallthru
      _
    // Predicated region
    $region66: #{_encoder_impl.1} parent=1 // pred_check
      _
    $region67: #{_encoder_impl.1} parent=1 // pred_check_branch
      %116 = sbr.rel (0) target = $region69
    $region68: #{_encoder_impl.1} parent=1 // pred_region
      %117 = dma.done [#allocation11], 2560
    $region69: #{_encoder_impl.1} parent=1 // pred_fallthru
      _
    %v119 = vld [vmem:[#allocation2] sm:$0xff]
    %v120 = vpack.c.bf16 %v119, %v119
    %v121 = vld [vmem:[#allocation4] sm:$0xff]
    %v122 = vld [vmem:[#allocation4 + $0x8] sm:$0xff]
    %v123 = vld [vmem:[#allocation4 + $0x10] sm:$0xff]
    %v124 = vld [vmem:[#allocation4 + $0x18] sm:$0xff]
    %v125 = vld [vmem:[#allocation4 + $0x20] sm:$0xff]
    %v126 = vld [vmem:[#allocation4 + $0x28] sm:$0xff]
    %v127 = vld [vmem:[#allocation4 + $0x30] sm:$0xff]
    %v128 = vld [vmem:[#allocation4 + $0x38] sm:$0xff]
    %v129 = vld [vmem:[%s2] sm:$0x3]
    %v131 = vlaneseq
    %v132 = vshrl.u32 %v131, 7
    %v133 = vsub.s32 0, %v132
    %v134 = vrot.slane %v129, %v133
    %v135 = vlaneseq
    %v136 = vshrl.u32 %v135, 7
    %v137 = vsub.s32 1, %v136
    %v138 = vrot.slane %v129, %v137
    %v149 = vunpack.c.l.b16 %v121
    %v150 = vunpack.c.h.b16 %v121
    %v151 = vunpack.c.l.b16 %v122
    %v152 = vunpack.c.h.b16 %v122
    %v153 = vunpack.c.l.b16 %v123
    %v154 = vunpack.c.h.b16 %v123
    %v155 = vunpack.c.l.b16 %v124
    %v156 = vunpack.c.h.b16 %v124
    %v157 = vunpack.c.l.b16 %v125
    %v158 = vunpack.c.h.b16 %v125
    %v159 = vunpack.c.l.b16 %v126
    %v160 = vunpack.c.h.b16 %v126
    %v161 = vunpack.c.l.b16 %v127
    %v162 = vunpack.c.h.b16 %v127
    %v163 = vunpack.c.l.b16 %v128
    %v164 = vunpack.c.h.b16 %v128
    %v165 = vpack.c.b16 %v151, %v149
    %v166 = vpack.c.b16 %v152, %v150
    %v167 = vpack.c.b16 %v155, %v153
    %v168 = vpack.c.b16 %v156, %v154
    %v169 = vpack.c.b16 %v159, %v157
    %v170 = vpack.c.b16 %v160, %v158
    %v171 = vpack.c.b16 %v163, %v161
    %v172 = vpack.c.b16 %v164, %v162
    %vm181 = vcmask 523264
    %v183 = vsel %vm181, %v120, 0
    %185 = vmatprep.subr.bf16.mxu0 %v166
    %186 = vmatpush1.bf16.msra.mxu0 %v165
    %187 = vmatprep.subr.bf16.mxu0 %v168
    %188 = vmatpush1.bf16.msra.mxu0 %v167
    %189 = vmatprep.subr.bf16.mxu0 %v170
    %190 = vmatpush1.bf16.msra.mxu0 %v169
    %191 = vmatprep.subr.bf16.mxu0 %v172
    %192 = vmatpush1.bf16.msra.mxu0 %v171
    %193 = vmatprep.subr.bf16.mxu0 0
    %194 = vmatpush1.bf16.msra.mxu0 0
    %195 = vmatprep.subr.bf16.mxu0 0
    %196 = vmatpush1.bf16.msra.mxu0 0
    %197 = vmatprep.subr.bf16.mxu0 0
    %198 = vmatpush1.bf16.msra.mxu0 0
    %199 = vmatprep.subr.bf16.mxu0 0
    %200 = vmatpush1.bf16.msra.mxu0 0
    %201 = vmatprep.subr.bf16.mxu0 0
    %202 = vmatpush1.bf16.msra.mxu0 0
    %203 = vmatprep.subr.bf16.mxu0 0
    %204 = vmatpush1.bf16.msra.mxu0 0
    %205 = vmatprep.subr.bf16.mxu0 0
    %206 = vmatpush1.bf16.msra.mxu0 0
    %207 = vmatprep.subr.bf16.mxu0 0
    %208 = vmatpush1.bf16.msra.mxu0 0
    %209 = vmatprep.subr.bf16.mxu0 0
    %210 = vmatpush1.bf16.msra.mxu0 0
    %211 = vmatprep.subr.bf16.mxu0 0
    %212 = vmatpush1.bf16.msra.mxu0 0
    %213 = vmatprep.subr.bf16.mxu0 0
    %214 = vmatpush1.bf16.msra.mxu0 0
    %215 = vmatprep.subr.bf16.mxu0 0
    %216 = vmatpush1.bf16.msra.mxu0 0
    %217 = vmatprep.mubr.bf16.mxu0 0
    %218 = vmatmul.mubr.bf16.gmra.mrb[0].mxu0 %v183
    %v219 = vpop.f32.mrb[0].mxu0
    %v220 = vadd.f32 %v134, %v219
    %v221 = vpop.f32.mrb[0].mxu0
    %v222 = vadd.f32 %v138, %v221
    %v223 = vpop.f32.mrb[0].mxu0
    %v224 = vpop.f32.mrb[0].mxu0
    %225 = vdwg.mxu0
    %v226 = vtanh.pop %v220
    %v227 = vtanh.pop %v222
    %v228 = vpack.c.bf16 %v226, %v226
    %v229 = vpack.c.bf16 %v227, %v227
    %v230 = vld [vmem:[#allocation6] sm:$0xff]
    %v231 = vld [vmem:[#allocation6 + $0x8] sm:$0xff]
    %v232 = vld [vmem:[#allocation6 + $0x10] sm:$0xff]
    %v233 = vld [vmem:[#allocation6 + $0x18] sm:$0xff]
    %v234 = vld [vmem:[#allocation6 + $0x20] sm:$0xff]
    %v235 = vld [vmem:[#allocation6 + $0x28] sm:$0xff]
    %v236 = vld [vmem:[#allocation6 + $0x30] sm:$0xff]
    %v237 = vld [vmem:[#allocation6 + $0x38] sm:$0xff]
    %v238 = vld [vmem:[#allocation6 + $0x40] sm:$0xff]
    %v239 = vld [vmem:[#allocation6 + $0x48] sm:$0xff]
    %v240 = vld [vmem:[#allocation6 + $0x50] sm:$0xff]
    %v241 = vld [vmem:[#allocation6 + $0x58] sm:$0xff]
    %v242 = vld [vmem:[#allocation6 + $0x60] sm:$0xff]
    %v243 = vld [vmem:[#allocation6 + $0x68] sm:$0xff]
    %v244 = vld [vmem:[#allocation6 + $0x70] sm:$0xff]
    %v245 = vld [vmem:[#allocation6 + $0x78] sm:$0xff]
    %v246 = vld [vmem:[#allocation6 + $0x80] sm:$0xff]
    %v247 = vld [vmem:[#allocation6 + $0x88] sm:$0xff]
    %v248 = vld [vmem:[#allocation6 + $0x90] sm:$0xff]
    %v249 = vld [vmem:[#allocation6 + $0x98] sm:$0xff]
    %v250 = vld [vmem:[%s4] sm:$0x3]
    %v252 = vlaneseq
    %v253 = vshrl.u32 %v252, 7
    %v254 = vsub.s32 0, %v253
    %v255 = vrot.slane %v250, %v254
    %v256 = vlaneseq
    %v257 = vshrl.u32 %v256, 7
    %v258 = vsub.s32 1, %v257
    %v259 = vrot.slane %v250, %v258
    %v282 = vunpack.c.l.b16 %v230
    %v283 = vunpack.c.h.b16 %v230
    %v284 = vunpack.c.l.b16 %v231
    %v285 = vunpack.c.h.b16 %v231
    %v286 = vunpack.c.l.b16 %v232
    %v287 = vunpack.c.h.b16 %v232
    %v288 = vunpack.c.l.b16 %v233
    %v289 = vunpack.c.h.b16 %v233
    %v290 = vunpack.c.l.b16 %v234
    %v291 = vunpack.c.h.b16 %v234
    %v292 = vunpack.c.l.b16 %v235
    %v293 = vunpack.c.h.b16 %v235
    %v294 = vunpack.c.l.b16 %v236
    %v295 = vunpack.c.h.b16 %v236
    %v296 = vunpack.c.l.b16 %v237
    %v297 = vunpack.c.h.b16 %v237
    %v298 = vunpack.c.l.b16 %v238
    %v299 = vunpack.c.h.b16 %v238
    %v300 = vunpack.c.l.b16 %v239
    %v301 = vunpack.c.h.b16 %v239
    %v302 = vunpack.c.l.b16 %v240
    %v303 = vunpack.c.h.b16 %v240
    %v304 = vunpack.c.l.b16 %v241
    %v305 = vunpack.c.h.b16 %v241
    %v306 = vunpack.c.l.b16 %v242
    %v307 = vunpack.c.h.b16 %v242
    %v308 = vunpack.c.l.b16 %v243
    %v309 = vunpack.c.h.b16 %v243
    %v310 = vunpack.c.l.b16 %v244
    %v311 = vunpack.c.h.b16 %v244
    %v312 = vunpack.c.l.b16 %v245
    %v313 = vunpack.c.h.b16 %v245
    %v314 = vunpack.c.l.b16 %v246
    %v315 = vunpack.c.h.b16 %v246
    %v316 = vunpack.c.l.b16 %v247
    %v317 = vunpack.c.h.b16 %v247
    %v318 = vunpack.c.l.b16 %v248
    %v319 = vunpack.c.h.b16 %v248
    %v320 = vunpack.c.l.b16 %v249
    %v321 = vunpack.c.h.b16 %v249
    %v322 = vpack.c.b16 %v284, %v282
    %v323 = vpack.c.b16 %v285, %v283
    %v324 = vpack.c.b16 %v288, %v286
    %v325 = vpack.c.b16 %v289, %v287
    %v326 = vpack.c.b16 %v292, %v290
    %v327 = vpack.c.b16 %v293, %v291
    %v328 = vpack.c.b16 %v296, %v294
    %v329 = vpack.c.b16 %v297, %v295
    %v330 = vpack.c.b16 %v300, %v298
    %v331 = vpack.c.b16 %v301, %v299
    %v332 = vpack.c.b16 %v304, %v302
    %v333 = vpack.c.b16 %v305, %v303
    %v334 = vpack.c.b16 %v308, %v306
    %v335 = vpack.c.b16 %v309, %v307
    %v336 = vpack.c.b16 %v312, %v310
    %v337 = vpack.c.b16 %v313, %v311
    %v338 = vpack.c.b16 %v316, %v314
    %v339 = vpack.c.b16 %v317, %v315
    %v340 = vpack.c.b16 %v320, %v318
    %v341 = vpack.c.b16 %v321, %v319
    %vm362 = vcmask 261120
    %v364 = vsel %vm362, %v229, 0
    %366 = vmatprep.subr.bf16.mxu0 %v323
    %367 = vmatpush1.bf16.msra.mxu0 %v322
    %368 = vmatprep.subr.bf16.mxu0 %v325
    %369 = vmatpush1.bf16.msra.mxu0 %v324
    %370 = vmatprep.subr.bf16.mxu0 %v327
    %371 = vmatpush1.bf16.msra.mxu0 %v326
    %372 = vmatprep.subr.bf16.mxu0 %v329
    %373 = vmatpush1.bf16.msra.mxu0 %v328
    %374 = vmatprep.subr.bf16.mxu0 %v331
    %375 = vmatpush1.bf16.msra.mxu0 %v330
    %376 = vmatprep.subr.bf16.mxu0 %v333
    %377 = vmatpush1.bf16.msra.mxu0 %v332
    %378 = vmatprep.subr.bf16.mxu0 %v335
    %379 = vmatpush1.bf16.msra.mxu0 %v334
    %380 = vmatprep.subr.bf16.mxu0 %v337
    %381 = vmatpush1.bf16.msra.mxu0 %v336
    %382 = vmatprep.subr.bf16.mxu0 %v339
    %383 = vmatpush1.bf16.msra.mxu0 %v338
    %384 = vmatprep.subr.bf16.mxu0 %v341
    %385 = vmatpush1.bf16.msra.mxu0 %v340
    %386 = vmatprep.subr.bf16.mxu0 0
    %387 = vmatpush1.bf16.msra.mxu0 0
    %388 = vmatprep.subr.bf16.mxu0 0
    %389 = vmatpush1.bf16.msra.mxu0 0
    %390 = vmatprep.subr.bf16.mxu0 0
    %391 = vmatpush1.bf16.msra.mxu0 0
    %392 = vmatprep.subr.bf16.mxu0 0
    %393 = vmatpush1.bf16.msra.mxu0 0
    %394 = vmatprep.subr.bf16.mxu0 0
    %395 = vmatpush1.bf16.msra.mxu0 0
    %396 = vmatprep.subr.bf16.mxu0 0
    %397 = vmatpush1.bf16.msra.mxu0 0
    %398 = vmatprep.mubr.bf16.mxu0 %v364
    %399 = vmatmul.mubr.bf16.gmra.mrb[0].mxu0 %v228
    %v400 = vpop.f32.mrb[0].mxu0
    %v401 = vadd.f32 %v255, %v400
    %v402 = vpop.f32.mrb[0].mxu0
    %v403 = vadd.f32 %v259, %v402
    %v404 = vpop.f32.mrb[0].mxu0
    %v405 = vpop.f32.mrb[0].mxu0
    %406 = vdwg.mxu0
    %v407 = vtanh.pop %v401
    %v408 = vtanh.pop %v403
    %v409 = vpack.c.bf16 %v407, %v407
    %v410 = vpack.c.bf16 %v408, %v408
    %v411 = vld [vmem:[#allocation7] sm:$0xff]
    %v412 = vld [vmem:[#allocation7 + $0x8] sm:$0xff]
    %v413 = vld [vmem:[#allocation7 + $0x10] sm:$0xff]
    %v414 = vld [vmem:[#allocation7 + $0x18] sm:$0xff]
    %v415 = vld [vmem:[#allocation7 + $0x20] sm:$0xff]
    %v416 = vld [vmem:[#allocation7 + $0x28] sm:$0xff]
    %v417 = vld [vmem:[#allocation7 + $0x30] sm:$0xff]
    %v418 = vld [vmem:[#allocation7 + $0x38] sm:$0xff]
    %v419 = vld [vmem:[#allocation7 + $0x40] sm:$0xff]
    %v420 = vld [vmem:[#allocation7 + $0x48] sm:$0xff]
    %v421 = vld [vmem:[#allocation7 + $0x50] sm:$0xff]
    %v422 = vld [vmem:[#allocation7 + $0x58] sm:$0xff]
    %v423 = vld [vmem:[#allocation7 + $0x60] sm:$0xff]
    %v424 = vld [vmem:[#allocation7 + $0x68] sm:$0xff]
    %v425 = vld [vmem:[#allocation7 + $0x70] sm:$0xff]
    %v426 = vld [vmem:[#allocation7 + $0x78] sm:$0xff]
    %v427 = vld [vmem:[#allocation7 + $0x80] sm:$0xff]
    %v428 = vld [vmem:[#allocation7 + $0x88] sm:$0xff]
    %v429 = vld [vmem:[#allocation7 + $0x90] sm:$0xff]
    %v430 = vld [vmem:[#allocation7 + $0x98] sm:$0xff]
    %v431 = vld [vmem:[%s6] sm:$0x3]
    %v433 = vlaneseq
    %v434 = vshrl.u32 %v433, 7
    %v435 = vsub.s32 0, %v434
    %v436 = vrot.slane %v431, %v435
    %v437 = vlaneseq
    %v438 = vshrl.u32 %v437, 7
    %v439 = vsub.s32 1, %v438
    %v440 = vrot.slane %v431, %v439
    %v463 = vunpack.c.l.b16 %v411
    %v464 = vunpack.c.h.b16 %v411
    %v465 = vunpack.c.l.b16 %v412
    %v466 = vunpack.c.h.b16 %v412
    %v467 = vunpack.c.l.b16 %v413
    %v468 = vunpack.c.h.b16 %v413
    %v469 = vunpack.c.l.b16 %v414
    %v470 = vunpack.c.h.b16 %v414
    %v471 = vunpack.c.l.b16 %v415
    %v472 = vunpack.c.h.b16 %v415
    %v473 = vunpack.c.l.b16 %v416
    %v474 = vunpack.c.h.b16 %v416
    %v475 = vunpack.c.l.b16 %v417
    %v476 = vunpack.c.h.b16 %v417
    %v477 = vunpack.c.l.b16 %v418
    %v478 = vunpack.c.h.b16 %v418
    %v479 = vunpack.c.l.b16 %v419
    %v480 = vunpack.c.h.b16 %v419
    %v481 = vunpack.c.l.b16 %v420
    %v482 = vunpack.c.h.b16 %v420
    %v483 = vunpack.c.l.b16 %v421
    %v484 = vunpack.c.h.b16 %v421
    %v485 = vunpack.c.l.b16 %v422
    %v486 = vunpack.c.h.b16 %v422
    %v487 = vunpack.c.l.b16 %v423
    %v488 = vunpack.c.h.b16 %v423
    %v489 = vunpack.c.l.b16 %v424
    %v490 = vunpack.c.h.b16 %v424
    %v491 = vunpack.c.l.b16 %v425
    %v492 = vunpack.c.h.b16 %v425
    %v493 = vunpack.c.l.b16 %v426
    %v494 = vunpack.c.h.b16 %v426
    %v495 = vunpack.c.l.b16 %v427
    %v496 = vunpack.c.h.b16 %v427
    %v497 = vunpack.c.l.b16 %v428
    %v498 = vunpack.c.h.b16 %v428
    %v499 = vunpack.c.l.b16 %v429
    %v500 = vunpack.c.h.b16 %v429
    %v501 = vunpack.c.l.b16 %v430
    %v502 = vunpack.c.h.b16 %v430
    %v503 = vpack.c.b16 %v465, %v463
    %v504 = vpack.c.b16 %v466, %v464
    %v505 = vpack.c.b16 %v469, %v467
    %v506 = vpack.c.b16 %v470, %v468
    %v507 = vpack.c.b16 %v473, %v471
    %v508 = vpack.c.b16 %v474, %v472
    %v509 = vpack.c.b16 %v477, %v475
    %v510 = vpack.c.b16 %v478, %v476
    %v511 = vpack.c.b16 %v481, %v479
    %v512 = vpack.c.b16 %v482, %v480
    %v513 = vpack.c.b16 %v485, %v483
    %v514 = vpack.c.b16 %v486, %v484
    %v515 = vpack.c.b16 %v489, %v487
    %v516 = vpack.c.b16 %v490, %v488
    %v517 = vpack.c.b16 %v493, %v491
    %v518 = vpack.c.b16 %v494, %v492
    %v519 = vpack.c.b16 %v497, %v495
    %v520 = vpack.c.b16 %v498, %v496
    %v521 = vpack.c.b16 %v501, %v499
    %v522 = vpack.c.b16 %v502, %v500
    %v544 = vsel %vm362, %v410, 0
    %546 = vmatprep.subr.bf16.mxu0 %v504
    %547 = vmatpush1.bf16.msra.mxu0 %v503
    %548 = vmatprep.subr.bf16.mxu0 %v506
    %549 = vmatpush1.bf16.msra.mxu0 %v505
    %550 = vmatprep.subr.bf16.mxu0 %v508
    %551 = vmatpush1.bf16.msra.mxu0 %v507
    %552 = vmatprep.subr.bf16.mxu0 %v510
    %553 = vmatpush1.bf16.msra.mxu0 %v509
    %554 = vmatprep.subr.bf16.mxu0 %v512
    %555 = vmatpush1.bf16.msra.mxu0 %v511
    %556 = vmatprep.subr.bf16.mxu0 %v514
    %557 = vmatpush1.bf16.msra.mxu0 %v513
    %558 = vmatprep.subr.bf16.mxu0 %v516
    %559 = vmatpush1.bf16.msra.mxu0 %v515
    %560 = vmatprep.subr.bf16.mxu0 %v518
    %561 = vmatpush1.bf16.msra.mxu0 %v517
    %562 = vmatprep.subr.bf16.mxu0 %v520
    %563 = vmatpush1.bf16.msra.mxu0 %v519
    %564 = vmatprep.subr.bf16.mxu0 %v522
    %565 = vmatpush1.bf16.msra.mxu0 %v521
    %566 = vmatprep.subr.bf16.mxu0 0
    %567 = vmatpush1.bf16.msra.mxu0 0
    %568 = vmatprep.subr.bf16.mxu0 0
    %569 = vmatpush1.bf16.msra.mxu0 0
    %570 = vmatprep.subr.bf16.mxu0 0
    %571 = vmatpush1.bf16.msra.mxu0 0
    %572 = vmatprep.subr.bf16.mxu0 0
    %573 = vmatpush1.bf16.msra.mxu0 0
    %574 = vmatprep.subr.bf16.mxu0 0
    %575 = vmatpush1.bf16.msra.mxu0 0
    %576 = vmatprep.subr.bf16.mxu0 0
    %577 = vmatpush1.bf16.msra.mxu0 0
    %578 = vmatprep.mubr.bf16.mxu0 %v544
    %579 = vmatmul.mubr.bf16.gmra.mrb[0].mxu0 %v409
    %v580 = vpop.f32.mrb[0].mxu0
    %v581 = vadd.f32 %v436, %v580
    %v582 = vpop.f32.mrb[0].mxu0
    %v583 = vadd.f32 %v440, %v582
    %v584 = vpop.f32.mrb[0].mxu0
    %v585 = vpop.f32.mrb[0].mxu0
    %586 = vdwg.mxu0
    %v587 = vtanh.pop %v581
    %v588 = vtanh.pop %v583
    %v589 = vpack.c.bf16 %v587, %v587
    %v590 = vpack.c.bf16 %v588, %v588
    %v591 = vld [vmem:[#allocation9] sm:$0xff]
    %v592 = vld [vmem:[#allocation9 + $0x8] sm:$0xff]
    %v593 = vld [vmem:[#allocation9 + $0x10] sm:$0xff]
    %v594 = vld [vmem:[#allocation9 + $0x18] sm:$0xff]
    %v595 = vld [vmem:[#allocation9 + $0x20] sm:$0xff]
    %v596 = vld [vmem:[#allocation9 + $0x28] sm:$0xff]
    %v597 = vld [vmem:[#allocation9 + $0x30] sm:$0xff]
    %v598 = vld [vmem:[#allocation9 + $0x38] sm:$0xff]
    %v599 = vld [vmem:[#allocation9 + $0x40] sm:$0xff]
    %v600 = vld [vmem:[#allocation9 + $0x48] sm:$0xff]
    %v601 = vld [vmem:[#allocation9 + $0x50] sm:$0xff]
    %v602 = vld [vmem:[#allocation9 + $0x58] sm:$0xff]
    %v603 = vld [vmem:[#allocation9 + $0x60] sm:$0xff]
    %v604 = vld [vmem:[#allocation9 + $0x68] sm:$0xff]
    %v605 = vld [vmem:[#allocation9 + $0x70] sm:$0xff]
    %v606 = vld [vmem:[#allocation9 + $0x78] sm:$0xff]
    %v607 = vld [vmem:[#allocation9 + $0x80] sm:$0xff]
    %v608 = vld [vmem:[#allocation9 + $0x88] sm:$0xff]
    %v609 = vld [vmem:[#allocation9 + $0x90] sm:$0xff]
    %v610 = vld [vmem:[#allocation9 + $0x98] sm:$0xff]
    %v611 = vld [vmem:[%s8] sm:$0x3]
    %v613 = vlaneseq
    %v614 = vshrl.u32 %v613, 7
    %v615 = vsub.s32 0, %v614
    %v616 = vrot.slane %v611, %v615
    %v617 = vlaneseq
    %v618 = vshrl.u32 %v617, 7
    %v619 = vsub.s32 1, %v618
    %v620 = vrot.slane %v611, %v619
    %v643 = vunpack.c.l.b16 %v591
    %v644 = vunpack.c.h.b16 %v591
    %v645 = vunpack.c.l.b16 %v592
    %v646 = vunpack.c.h.b16 %v592
    %v647 = vunpack.c.l.b16 %v593
    %v648 = vunpack.c.h.b16 %v593
    %v649 = vunpack.c.l.b16 %v594
    %v650 = vunpack.c.h.b16 %v594
    %v651 = vunpack.c.l.b16 %v595
    %v652 = vunpack.c.h.b16 %v595
    %v653 = vunpack.c.l.b16 %v596
    %v654 = vunpack.c.h.b16 %v596
    %v655 = vunpack.c.l.b16 %v597
    %v656 = vunpack.c.h.b16 %v597
    %v657 = vunpack.c.l.b16 %v598
    %v658 = vunpack.c.h.b16 %v598
    %v659 = vunpack.c.l.b16 %v599
    %v660 = vunpack.c.h.b16 %v599
    %v661 = vunpack.c.l.b16 %v600
    %v662 = vunpack.c.h.b16 %v600
    %v663 = vunpack.c.l.b16 %v601
    %v664 = vunpack.c.h.b16 %v601
    %v665 = vunpack.c.l.b16 %v602
    %v666 = vunpack.c.h.b16 %v602
    %v667 = vunpack.c.l.b16 %v603
    %v668 = vunpack.c.h.b16 %v603
    %v669 = vunpack.c.l.b16 %v604
    %v670 = vunpack.c.h.b16 %v604
    %v671 = vunpack.c.l.b16 %v605
    %v672 = vunpack.c.h.b16 %v605
    %v673 = vunpack.c.l.b16 %v606
    %v674 = vunpack.c.h.b16 %v606
    %v675 = vunpack.c.l.b16 %v607
    %v676 = vunpack.c.h.b16 %v607
    %v677 = vunpack.c.l.b16 %v608
    %v678 = vunpack.c.h.b16 %v608
    %v679 = vunpack.c.l.b16 %v609
    %v680 = vunpack.c.h.b16 %v609
    %v681 = vunpack.c.l.b16 %v610
    %v682 = vunpack.c.h.b16 %v610
    %v683 = vpack.c.b16 %v645, %v643
    %v684 = vpack.c.b16 %v646, %v644
    %v685 = vpack.c.b16 %v649, %v647
    %v686 = vpack.c.b16 %v650, %v648
    %v687 = vpack.c.b16 %v653, %v651
    %v688 = vpack.c.b16 %v654, %v652
    %v689 = vpack.c.b16 %v657, %v655
    %v690 = vpack.c.b16 %v658, %v656
    %v691 = vpack.c.b16 %v661, %v659
    %v692 = vpack.c.b16 %v662, %v660
    %v693 = vpack.c.b16 %v665, %v663
    %v694 = vpack.c.b16 %v666, %v664
    %v695 = vpack.c.b16 %v669, %v667
    %v696 = vpack.c.b16 %v670, %v668
    %v697 = vpack.c.b16 %v673, %v671
    %v698 = vpack.c.b16 %v674, %v672
    %v699 = vpack.c.b16 %v677, %v675
    %v700 = vpack.c.b16 %v678, %v676
    %v701 = vpack.c.b16 %v681, %v679
    %v702 = vpack.c.b16 %v682, %v680
    %v724 = vsel %vm362, %v590, 0
    %726 = vmatprep.subr.bf16.mxu0 %v684
    %727 = vmatpush1.bf16.msra.mxu0 %v683
    %728 = vmatprep.subr.bf16.mxu0 %v686
    %729 = vmatpush1.bf16.msra.mxu0 %v685
    %730 = vmatprep.subr.bf16.mxu0 %v688
    %731 = vmatpush1.bf16.msra.mxu0 %v687
    %732 = vmatprep.subr.bf16.mxu0 %v690
    %733 = vmatpush1.bf16.msra.mxu0 %v689
    %734 = vmatprep.subr.bf16.mxu0 %v692
    %735 = vmatpush1.bf16.msra.mxu0 %v691
    %736 = vmatprep.subr.bf16.mxu0 %v694
    %737 = vmatpush1.bf16.msra.mxu0 %v693
    %738 = vmatprep.subr.bf16.mxu0 %v696
    %739 = vmatpush1.bf16.msra.mxu0 %v695
    %740 = vmatprep.subr.bf16.mxu0 %v698
    %741 = vmatpush1.bf16.msra.mxu0 %v697
    %742 = vmatprep.subr.bf16.mxu0 %v700
    %743 = vmatpush1.bf16.msra.mxu0 %v699
    %744 = vmatprep.subr.bf16.mxu0 %v702
    %745 = vmatpush1.bf16.msra.mxu0 %v701
    %746 = vmatprep.subr.bf16.mxu0 0
    %747 = vmatpush1.bf16.msra.mxu0 0
    %748 = vmatprep.subr.bf16.mxu0 0
    %749 = vmatpush1.bf16.msra.mxu0 0
    %750 = vmatprep.subr.bf16.mxu0 0
    %751 = vmatpush1.bf16.msra.mxu0 0
    %752 = vmatprep.subr.bf16.mxu0 0
    %753 = vmatpush1.bf16.msra.mxu0 0
    %754 = vmatprep.subr.bf16.mxu0 0
    %755 = vmatpush1.bf16.msra.mxu0 0
    %756 = vmatprep.subr.bf16.mxu0 0
    %757 = vmatpush1.bf16.msra.mxu0 0
    %758 = vmatprep.mubr.bf16.mxu0 %v724
    %759 = vmatmul.mubr.bf16.gmra.mrb[0].mxu0 %v589
    %v760 = vpop.f32.mrb[0].mxu0
    %v761 = vadd.f32 %v616, %v760
    %v762 = vpop.f32.mrb[0].mxu0
    %v763 = vadd.f32 %v620, %v762
    %v764 = vpop.f32.mrb[0].mxu0
    %v765 = vpop.f32.mrb[0].mxu0
    %766 = vdwg.mxu0
    %v767 = vtanh.pop %v761
    %v768 = vtanh.pop %v763
    %v769 = vpack.c.bf16 %v767, %v767
    %v770 = vpack.c.bf16 %v768, %v768
    %v771 = vld [vmem:[#allocation10] sm:$0xff]
    %v772 = vld [vmem:[#allocation10 + $0x8] sm:$0xff]
    %v773 = vld [vmem:[#allocation10 + $0x10] sm:$0xff]
    %v774 = vld [vmem:[#allocation10 + $0x18] sm:$0xff]
    %v775 = vld [vmem:[#allocation10 + $0x20] sm:$0xff]
    %v776 = vld [vmem:[#allocation10 + $0x28] sm:$0xff]
    %v777 = vld [vmem:[#allocation10 + $0x30] sm:$0xff]
    %v778 = vld [vmem:[#allocation10 + $0x38] sm:$0xff]
    %v779 = vld [vmem:[#allocation10 + $0x40] sm:$0xff]
    %v780 = vld [vmem:[#allocation10 + $0x48] sm:$0xff]
    %v781 = vld [vmem:[#allocation10 + $0x50] sm:$0xff]
    %v782 = vld [vmem:[#allocation10 + $0x58] sm:$0xff]
    %v783 = vld [vmem:[#allocation10 + $0x60] sm:$0xff]
    %v784 = vld [vmem:[#allocation10 + $0x68] sm:$0xff]
    %v785 = vld [vmem:[#allocation10 + $0x70] sm:$0xff]
    %v786 = vld [vmem:[#allocation10 + $0x78] sm:$0xff]
    %v787 = vld [vmem:[#allocation10 + $0x80] sm:$0xff]
    %v788 = vld [vmem:[#allocation10 + $0x88] sm:$0xff]
    %v789 = vld [vmem:[#allocation10 + $0x90] sm:$0xff]
    %v790 = vld [vmem:[#allocation10 + $0x98] sm:$0xff]
    %v791 = vld [vmem:[%s10] sm:$0x3]
    %v793 = vlaneseq
    %v794 = vshrl.u32 %v793, 7
    %v795 = vsub.s32 0, %v794
    %v796 = vrot.slane %v791, %v795
    %v797 = vlaneseq
    %v798 = vshrl.u32 %v797, 7
    %v799 = vsub.s32 1, %v798
    %v800 = vrot.slane %v791, %v799
    %v823 = vunpack.c.l.b16 %v771
    %v824 = vunpack.c.h.b16 %v771
    %v825 = vunpack.c.l.b16 %v772
    %v826 = vunpack.c.h.b16 %v772
    %v827 = vunpack.c.l.b16 %v773
    %v828 = vunpack.c.h.b16 %v773
    %v829 = vunpack.c.l.b16 %v774
    %v830 = vunpack.c.h.b16 %v774
    %v831 = vunpack.c.l.b16 %v775
    %v832 = vunpack.c.h.b16 %v775
    %v833 = vunpack.c.l.b16 %v776
    %v834 = vunpack.c.h.b16 %v776
    %v835 = vunpack.c.l.b16 %v777
    %v836 = vunpack.c.h.b16 %v777
    %v837 = vunpack.c.l.b16 %v778
    %v838 = vunpack.c.h.b16 %v778
    %v839 = vunpack.c.l.b16 %v779
    %v840 = vunpack.c.h.b16 %v779
    %v841 = vunpack.c.l.b16 %v780
    %v842 = vunpack.c.h.b16 %v780
    %v843 = vunpack.c.l.b16 %v781
    %v844 = vunpack.c.h.b16 %v781
    %v845 = vunpack.c.l.b16 %v782
    %v846 = vunpack.c.h.b16 %v782
    %v847 = vunpack.c.l.b16 %v783
    %v848 = vunpack.c.h.b16 %v783
    %v849 = vunpack.c.l.b16 %v784
    %v850 = vunpack.c.h.b16 %v784
    %v851 = vunpack.c.l.b16 %v785
    %v852 = vunpack.c.h.b16 %v785
    %v853 = vunpack.c.l.b16 %v786
    %v854 = vunpack.c.h.b16 %v786
    %v855 = vunpack.c.l.b16 %v787
    %v856 = vunpack.c.h.b16 %v787
    %v857 = vunpack.c.l.b16 %v788
    %v858 = vunpack.c.h.b16 %v788
    %v859 = vunpack.c.l.b16 %v789
    %v860 = vunpack.c.h.b16 %v789
    %v861 = vunpack.c.l.b16 %v790
    %v862 = vunpack.c.h.b16 %v790
    %v863 = vpack.c.b16 %v825, %v823
    %v864 = vpack.c.b16 %v826, %v824
    %v865 = vpack.c.b16 %v829, %v827
    %v866 = vpack.c.b16 %v830, %v828
    %v867 = vpack.c.b16 %v833, %v831
    %v868 = vpack.c.b16 %v834, %v832
    %v869 = vpack.c.b16 %v837, %v835
    %v870 = vpack.c.b16 %v838, %v836
    %v871 = vpack.c.b16 %v841, %v839
    %v872 = vpack.c.b16 %v842, %v840
    %v873 = vpack.c.b16 %v845, %v843
    %v874 = vpack.c.b16 %v846, %v844
    %v875 = vpack.c.b16 %v849, %v847
    %v876 = vpack.c.b16 %v850, %v848
    %v877 = vpack.c.b16 %v853, %v851
    %v878 = vpack.c.b16 %v854, %v852
    %v879 = vpack.c.b16 %v857, %v855
    %v880 = vpack.c.b16 %v858, %v856
    %v881 = vpack.c.b16 %v861, %v859
    %v882 = vpack.c.b16 %v862, %v860
    %v904 = vsel %vm362, %v770, 0
    %906 = vmatprep.subr.bf16.mxu0 %v864
    %907 = vmatpush1.bf16.msra.mxu0 %v863
    %908 = vmatprep.subr.bf16.mxu0 %v866
    %909 = vmatpush1.bf16.msra.mxu0 %v865
    %910 = vmatprep.subr.bf16.mxu0 %v868
    %911 = vmatpush1.bf16.msra.mxu0 %v867
    %912 = vmatprep.subr.bf16.mxu0 %v870
    %913 = vmatpush1.bf16.msra.mxu0 %v869
    %914 = vmatprep.subr.bf16.mxu0 %v872
    %915 = vmatpush1.bf16.msra.mxu0 %v871
    %916 = vmatprep.subr.bf16.mxu0 %v874
    %917 = vmatpush1.bf16.msra.mxu0 %v873
    %918 = vmatprep.subr.bf16.mxu0 %v876
    %919 = vmatpush1.bf16.msra.mxu0 %v875
    %920 = vmatprep.subr.bf16.mxu0 %v878
    %921 = vmatpush1.bf16.msra.mxu0 %v877
    %922 = vmatprep.subr.bf16.mxu0 %v880
    %923 = vmatpush1.bf16.msra.mxu0 %v879
    %924 = vmatprep.subr.bf16.mxu0 %v882
    %925 = vmatpush1.bf16.msra.mxu0 %v881
    %926 = vmatprep.subr.bf16.mxu0 0
    %927 = vmatpush1.bf16.msra.mxu0 0
    %928 = vmatprep.subr.bf16.mxu0 0
    %929 = vmatpush1.bf16.msra.mxu0 0
    %930 = vmatprep.subr.bf16.mxu0 0
    %931 = vmatpush1.bf16.msra.mxu0 0
    %932 = vmatprep.subr.bf16.mxu0 0
    %933 = vmatpush1.bf16.msra.mxu0 0
    %934 = vmatprep.subr.bf16.mxu0 0
    %935 = vmatpush1.bf16.msra.mxu0 0
    %936 = vmatprep.subr.bf16.mxu0 0
    %937 = vmatpush1.bf16.msra.mxu0 0
    %938 = vmatprep.mubr.bf16.mxu0 %v904
    %939 = vmatmul.mubr.bf16.gmra.mrb[0].mxu0 %v769
    %v940 = vpop.f32.mrb[0].mxu0
    %v941 = vadd.f32 %v796, %v940
    %v942 = vpop.f32.mrb[0].mxu0
    %v943 = vadd.f32 %v800, %v942
    %v944 = vpop.f32.mrb[0].mxu0
    %v945 = vpop.f32.mrb[0].mxu0
    %946 = vdwg.mxu0
    %947 = vst [vmem:[%s11] sm:$0xff] %v941
    %948 = vst.msk [vmem:[%s11 + $0x8] sm:$0xff] %vm362, %v943
    // Predicated region
    $region70: #{_encoder_impl.1} parent=1 // pred_check
      _
    $region71: #{_encoder_impl.1} parent=1 // pred_check_branch
      %950 = sbr.rel (0) target = $region73
    $region72: #{_encoder_impl.1} parent=1 // pred_region
      _
    $region73: #{_encoder_impl.1} parent=1 // pred_fallthru
      _
    // Predicated region
    $region74: #{_encoder_impl.1} parent=1 // pred_check
      _
    $region75: #{_encoder_impl.1} parent=1 // pred_check_branch
      %952 = sbr.rel (0) target = $region77
    $region76: #{_encoder_impl.1} parent=1 // pred_region
      _
    $region77: #{_encoder_impl.1} parent=1 // pred_fallthru
      _
    %953 = vsyncpa [#allocation3], 1
    %954 = vsyncpa [#allocation5], 1
    %955 = vsyncpa [#allocation8], 1
    %956 = vsyncpa [#allocation11], 1

</llo_original>
